<compile_context>
chip_gen: v7x
topology: tpu7x:2x2x1
jax: 0.10.0
libtpu: 0.0.40
codegen_flags: <defaults>
</compile_context>

<pallas_src>
import functools

import jax
import jax.numpy as jnp
from jax import lax
from jax.experimental import pallas as pl
from jax.experimental.pallas import tpu as pltpu


def _mha_kernel(q_ref, k_ref, wq_ref, wk_ref, wv_ref, o_ref, *,
                num_heads, head_dim):
    # One grid step = one batch element, ALL heads fused.
    q = q_ref[0]           # [T_q, Dq]
    kk = k_ref[0]          # [T_k, Dk]

    # Full-width projections: MXU output dim = num_units (not head_dim), and
    # query/key are DMA'd once per batch instead of once per (head, batch).
    # The 1/sqrt(key_dim) scale is pre-folded into wq_ref by the wrapper.
    Q = jnp.dot(q, wq_ref[...], preferred_element_type=jnp.float32)    # [T_q, U]
    K = jnp.dot(kk, wk_ref[...], preferred_element_type=jnp.float32)   # [T_k, U]
    V = jnp.dot(kk, wv_ref[...], preferred_element_type=jnp.float32)   # [T_k, U]

    outs = []
    for h in range(num_heads):                 # static unroll, num_heads is small
        sl = slice(h * head_dim, (h + 1) * head_dim)
        Qh, Kh, Vh = Q[:, sl], K[:, sl], V[:, sl]
        # Q @ K^T without materializing a transpose: contract last dims directly.
        scores = lax.dot_general(Qh, Kh, (((1,), (1,)), ((), ())),
                                 preferred_element_type=jnp.float32)   # [T_q, T_k]
        # Numerically-safe softmax over the key axis; divide goes to the EUP.
        m = jnp.max(scores, axis=-1, keepdims=True)
        e = jnp.exp(scores - m)
        denom = jnp.sum(e, axis=-1, keepdims=True)
        p = e * pl.reciprocal(denom, approx=True)
        outs.append(jnp.dot(p.astype(Vh.dtype), Vh,
                            preferred_element_type=jnp.float32))       # [T_q, hd]

    # Single full-width (lane-dense) store of the concatenated heads.
    o_ref[0] = jnp.concatenate(outs, axis=-1).astype(o_ref.dtype)


def multi_head_attention(query, key, w_query, w_key, w_value, num_heads, key_dim):
    """
    query:   [N, T_q, query_dim]
    key:     [N, T_k, key_dim]
    w_query: [num_units, query_dim]   (PyTorch nn.Linear weight layout, no bias)
    w_key:   [num_units, key_dim]
    w_value: [num_units, key_dim]
    returns: [N, T_q, num_units]
    """
    N, T_q, Dq = query.shape
    _, T_k, Dk = key.shape
    num_units = w_query.shape[0]
    head_dim = num_units // num_heads

    # Pre-transpose the Linear weights to [in_dim, num_units] and fold the
    # 1/sqrt(key_dim) score scale into Wq (free at trace time; removes a
    # full-size VPU multiply over the [T_q, T_k] scores inside the kernel).
    scale = 1.0 / (key_dim ** 0.5)
    wq_t = (w_query.T * scale).astype(query.dtype)   # [Dq, U]
    wk_t = w_key.T.astype(key.dtype)                 # [Dk, U]
    wv_t = w_value.T.astype(key.dtype)               # [Dk, U]

    kernel = functools.partial(_mha_kernel, num_heads=num_heads, head_dim=head_dim)

    # TODO(synk): for long sequences, add a trailing "arbitrary" T_k grid axis
    # with an online-softmax accumulator (flash-style) so the f32 scores tile
    # and double-buffered K/V fit v7x's 64 MiB VMEM.
    out = pl.pallas_call(
        kernel,
        out_shape=jax.ShapeDtypeStruct((N, T_q, num_units), query.dtype),
        grid_spec=pltpu.PrefetchScalarGridSpec(
            num_scalar_prefetch=0,
            grid=(N,),
            in_specs=[
                pl.BlockSpec((1, T_q, Dq), lambda n: (n, 0, 0)),        # query
                pl.BlockSpec((1, T_k, Dk), lambda n: (n, 0, 0)),        # key
                pl.BlockSpec((Dq, num_units), lambda n: (0, 0)),        # Wq (scaled)
                pl.BlockSpec((Dk, num_units), lambda n: (0, 0)),        # Wk
                pl.BlockSpec((Dk, num_units), lambda n: (0, 0)),        # Wv
            ],
            out_specs=pl.BlockSpec((1, T_q, num_units), lambda n: (n, 0, 0)),
        ),
        compiler_params=pltpu.CompilerParams(
            dimension_semantics=("parallel",)),   # N>=2 keeps both v7x TCs busy
    )(query, key, wq_t, wk_t, wv_t)
    return out


def _reference(query, key, w_query, w_key, w_value, num_heads, key_dim):
    num_units = w_query.shape[0]
    head_dim = num_units // num_heads
    qs = query @ w_query.T            # [N, T_q, U]
    ks = key @ w_key.T                # [N, T_k, U]
    vs = key @ w_value.T

    def split(x):
        N, T, U = x.shape
        return jnp.transpose(x.reshape(N, T, num_heads, head_dim), (2, 0, 1, 3))

    qs, ks, vs = split(qs), split(ks), split(vs)   # [h, N, T, hd]
    scores = jnp.einsum("hnqd,hnkd->hnqk", qs, ks) / (key_dim ** 0.5)
    scores = jax.nn.softmax(scores, axis=-1)
    out = jnp.einsum("hnqk,hnkd->hnqd", scores, vs)
    N, T_q = query.shape[0], query.shape[1]
    return jnp.transpose(out, (1, 2, 0, 3)).reshape(N, T_q, num_units)


if __name__ == "__main__":
    # Small shapes consistent with the module's forward.
    N, T_q, T_k = 2, 8, 16
    query_dim, key_dim, num_units, num_heads = 16, 16, 32, 4

    key0 = jax.random.PRNGKey(0)
    k1, k2, k3, k4, k5 = jax.random.split(key0, 5)
    query = jax.random.normal(k1, (N, T_q, query_dim), dtype=jnp.float32)
    key_in = jax.random.normal(k2, (N, T_k, key_dim), dtype=jnp.float32)
    # "nn.Linear"-shaped weights: [out_features, in_features]
    w_query = jax.random.normal(k3, (num_units, query_dim), dtype=jnp.float32) * 0.1
    w_key = jax.random.normal(k4, (num_units, key_dim), dtype=jnp.float32) * 0.1
    w_value = jax.random.normal(k5, (num_units, key_dim), dtype=jnp.float32) * 0.1

    out = multi_head_attention(query, key_in, w_query, w_key, w_value,
                               num_heads, key_dim)
    out = jax.block_until_ready(out)

    ref = _reference(query, key_in, w_query, w_key, w_value, num_heads, key_dim)
    assert out.shape == (N, T_q, num_units)
    # Tolerance loosened slightly for the approx (EUP) softmax reciprocal.
    assert jnp.allclose(out, ref, atol=5e-3, rtol=5e-3)

    print("KERNEL_OK")
</pallas_src>

<mosaic_0001>
module attributes {stable_mosaic.version = 11 : i64} {
  func.func @_mha_kernel(%arg0: i32, %arg1: memref<1x8x16xf32, #tpu.memory_space<vmem>>, %arg2: memref<1x16x16xf32, #tpu.memory_space<vmem>>, %arg3: memref<16x32xf32, #tpu.memory_space<vmem>>, %arg4: memref<16x32xf32, #tpu.memory_space<vmem>>, %arg5: memref<16x32xf32, #tpu.memory_space<vmem>>, %arg6: memref<1x8x32xf32, #tpu.memory_space<vmem>>) attributes {dimension_semantics = [#tpu.dimension_semantics<parallel>], iteration_bounds = array<i64: 2>, scalar_prefetch = 0 : i64, scratch_operands = 0 : i64, tpu.core_type = #tpu.core_type<tc>, window_params = [{transform_indices = @transform_0, window_bounds = array<i64: 1, 8, 16>}, {transform_indices = @transform_1, window_bounds = array<i64: 1, 16, 16>}, {pipeline_mode = #tpu.pipeline_mode<synchronous>, transform_indices = @transform_2, window_bounds = array<i64: 16, 32>}, {pipeline_mode = #tpu.pipeline_mode<synchronous>, transform_indices = @transform_3, window_bounds = array<i64: 16, 32>}, {pipeline_mode = #tpu.pipeline_mode<synchronous>, transform_indices = @transform_4, window_bounds = array<i64: 16, 32>}, {transform_indices = @transform_5, window_bounds = array<i64: 1, 8, 32>}]} {
    %c0 = arith.constant 0 : index
    %c0_0 = arith.constant 0 : index
    %c0_1 = arith.constant 0 : index
    %0 = vector.load %arg1[%c0, %c0_0, %c0_1] : memref<1x8x16xf32, #tpu.memory_space<vmem>>, vector<1x8x16xf32>
    %1 = vector.shape_cast %0 : vector<1x8x16xf32> to vector<8x16xf32>
    %c0_2 = arith.constant 0 : index
    %c0_3 = arith.constant 0 : index
    %c0_4 = arith.constant 0 : index
    %2 = vector.load %arg2[%c0_2, %c0_3, %c0_4] : memref<1x16x16xf32, #tpu.memory_space<vmem>>, vector<1x16x16xf32>
    %3 = vector.shape_cast %2 : vector<1x16x16xf32> to vector<16x16xf32>
    %c0_5 = arith.constant 0 : index
    %c0_6 = arith.constant 0 : index
    %4 = vector.load %arg3[%c0_5, %c0_6] : memref<16x32xf32, #tpu.memory_space<vmem>>, vector<16x32xf32>
    %cst = arith.constant dense<0.000000e+00> : vector<8x32xf32>
    %5 = tpu.matmul %1, %4, %cst {dimension_numbers = #tpu.dot_dimension_numbers<[1], [0], [0], [1], [0, 0, 1, 1], [], []>} : vector<8x16xf32>, vector<16x32xf32>, vector<8x32xf32> -> vector<8x32xf32>
    %c0_7 = arith.constant 0 : index
    %c0_8 = arith.constant 0 : index
    %6 = vector.load %arg4[%c0_7, %c0_8] : memref<16x32xf32, #tpu.memory_space<vmem>>, vector<16x32xf32>
    %cst_9 = arith.constant dense<0.000000e+00> : vector<16x32xf32>
    %7 = tpu.matmul %3, %6, %cst_9 {dimension_numbers = #tpu.dot_dimension_numbers<[1], [0], [0], [1], [0, 0, 1, 1], [], []>} : vector<16x16xf32>, vector<16x32xf32>, vector<16x32xf32> -> vector<16x32xf32>
    %c0_10 = arith.constant 0 : index
    %c0_11 = arith.constant 0 : index
    %8 = vector.load %arg5[%c0_10, %c0_11] : memref<16x32xf32, #tpu.memory_space<vmem>>, vector<16x32xf32>
    %cst_12 = arith.constant dense<0.000000e+00> : vector<16x32xf32>
    %9 = tpu.matmul %3, %8, %cst_12 {dimension_numbers = #tpu.dot_dimension_numbers<[1], [0], [0], [1], [0, 0, 1, 1], [], []>} : vector<16x16xf32>, vector<16x32xf32>, vector<16x32xf32> -> vector<16x32xf32>
    %10 = vector.extract_strided_slice %5 {offsets = [0, 0], sizes = [8, 8], strides = [1, 1]} : vector<8x32xf32> to vector<8x8xf32>
    %11 = vector.extract_strided_slice %7 {offsets = [0, 0], sizes = [16, 8], strides = [1, 1]} : vector<16x32xf32> to vector<16x8xf32>
    %12 = vector.extract_strided_slice %9 {offsets = [0, 0], sizes = [16, 8], strides = [1, 1]} : vector<16x32xf32> to vector<16x8xf32>
    %cst_13 = arith.constant dense<0.000000e+00> : vector<8x16xf32>
    %13 = tpu.matmul %10, %11, %cst_13 {dimension_numbers = #tpu.dot_dimension_numbers<[1], [1], [0], [0], [0, 0, 1, 0], [], []>} : vector<8x8xf32>, vector<16x8xf32>, vector<8x16xf32> -> vector<8x16xf32>
    %cst_14 = arith.constant dense<0xFF800000> : vector<8xf32>
    %14 = vector.multi_reduction <maximumf>, %13, %cst_14 [1] : vector<8x16xf32> to vector<8xf32>
    %15 = vector.shape_cast %14 : vector<8xf32> to vector<8x1xf32>
    %16 = vector.broadcast %15 : vector<8x1xf32> to vector<8x16xf32>
    %17 = arith.subf %13, %16 : vector<8x16xf32>
    %18 = math.exp %17 : vector<8x16xf32>
    %cst_15 = arith.constant dense<0.000000e+00> : vector<8xf32>
    %19 = vector.multi_reduction <add>, %18, %cst_15 [1] : vector<8x16xf32> to vector<8xf32>
    %20 = vector.shape_cast %19 : vector<8xf32> to vector<8x1xf32>
    %21 = tpu.reciprocal %20 {approx = true} : vector<8x1xf32> -> vector<8x1xf32>
    %22 = vector.broadcast %21 : vector<8x1xf32> to vector<8x16xf32>
    %23 = arith.mulf %18, %22 : vector<8x16xf32>
    %cst_16 = arith.constant dense<0.000000e+00> : vector<8x8xf32>
    %24 = tpu.matmul %23, %12, %cst_16 {dimension_numbers = #tpu.dot_dimension_numbers<[1], [0], [0], [1], [0, 0, 1, 1], [], []>} : vector<8x16xf32>, vector<16x8xf32>, vector<8x8xf32> -> vector<8x8xf32>
    %25 = vector.extract_strided_slice %5 {offsets = [0, 8], sizes = [8, 8], strides = [1, 1]} : vector<8x32xf32> to vector<8x8xf32>
    %26 = vector.extract_strided_slice %7 {offsets = [0, 8], sizes = [16, 8], strides = [1, 1]} : vector<16x32xf32> to vector<16x8xf32>
    %27 = vector.extract_strided_slice %9 {offsets = [0, 8], sizes = [16, 8], strides = [1, 1]} : vector<16x32xf32> to vector<16x8xf32>
    %cst_17 = arith.constant dense<0.000000e+00> : vector<8x16xf32>
    %28 = tpu.matmul %25, %26, %cst_17 {dimension_numbers = #tpu.dot_dimension_numbers<[1], [1], [0], [0], [0, 0, 1, 0], [], []>} : vector<8x8xf32>, vector<16x8xf32>, vector<8x16xf32> -> vector<8x16xf32>
    %cst_18 = arith.constant dense<0xFF800000> : vector<8xf32>
    %29 = vector.multi_reduction <maximumf>, %28, %cst_18 [1] : vector<8x16xf32> to vector<8xf32>
    %30 = vector.shape_cast %29 : vector<8xf32> to vector<8x1xf32>
    %31 = vector.broadcast %30 : vector<8x1xf32> to vector<8x16xf32>
    %32 = arith.subf %28, %31 : vector<8x16xf32>
    %33 = math.exp %32 : vector<8x16xf32>
    %cst_19 = arith.constant dense<0.000000e+00> : vector<8xf32>
    %34 = vector.multi_reduction <add>, %33, %cst_19 [1] : vector<8x16xf32> to vector<8xf32>
    %35 = vector.shape_cast %34 : vector<8xf32> to vector<8x1xf32>
    %36 = tpu.reciprocal %35 {approx = true} : vector<8x1xf32> -> vector<8x1xf32>
    %37 = vector.broadcast %36 : vector<8x1xf32> to vector<8x16xf32>
    %38 = arith.mulf %33, %37 : vector<8x16xf32>
    %cst_20 = arith.constant dense<0.000000e+00> : vector<8x8xf32>
    %39 = tpu.matmul %38, %27, %cst_20 {dimension_numbers = #tpu.dot_dimension_numbers<[1], [0], [0], [1], [0, 0, 1, 1], [], []>} : vector<8x16xf32>, vector<16x8xf32>, vector<8x8xf32> -> vector<8x8xf32>
    %40 = vector.extract_strided_slice %5 {offsets = [0, 16], sizes = [8, 8], strides = [1, 1]} : vector<8x32xf32> to vector<8x8xf32>
    %41 = vector.extract_strided_slice %7 {offsets = [0, 16], sizes = [16, 8], strides = [1, 1]} : vector<16x32xf32> to vector<16x8xf32>
    %42 = vector.extract_strided_slice %9 {offsets = [0, 16], sizes = [16, 8], strides = [1, 1]} : vector<16x32xf32> to vector<16x8xf32>
    %cst_21 = arith.constant dense<0.000000e+00> : vector<8x16xf32>
    %43 = tpu.matmul %40, %41, %cst_21 {dimension_numbers = #tpu.dot_dimension_numbers<[1], [1], [0], [0], [0, 0, 1, 0], [], []>} : vector<8x8xf32>, vector<16x8xf32>, vector<8x16xf32> -> vector<8x16xf32>
    %cst_22 = arith.constant dense<0xFF800000> : vector<8xf32>
    %44 = vector.multi_reduction <maximumf>, %43, %cst_22 [1] : vector<8x16xf32> to vector<8xf32>
    %45 = vector.shape_cast %44 : vector<8xf32> to vector<8x1xf32>
    %46 = vector.broadcast %45 : vector<8x1xf32> to vector<8x16xf32>
    %47 = arith.subf %43, %46 : vector<8x16xf32>
    %48 = math.exp %47 : vector<8x16xf32>
    %cst_23 = arith.constant dense<0.000000e+00> : vector<8xf32>
    %49 = vector.multi_reduction <add>, %48, %cst_23 [1] : vector<8x16xf32> to vector<8xf32>
    %50 = vector.shape_cast %49 : vector<8xf32> to vector<8x1xf32>
    %51 = tpu.reciprocal %50 {approx = true} : vector<8x1xf32> -> vector<8x1xf32>
    %52 = vector.broadcast %51 : vector<8x1xf32> to vector<8x16xf32>
    %53 = arith.mulf %48, %52 : vector<8x16xf32>
    %cst_24 = arith.constant dense<0.000000e+00> : vector<8x8xf32>
    %54 = tpu.matmul %53, %42, %cst_24 {dimension_numbers = #tpu.dot_dimension_numbers<[1], [0], [0], [1], [0, 0, 1, 1], [], []>} : vector<8x16xf32>, vector<16x8xf32>, vector<8x8xf32> -> vector<8x8xf32>
    %55 = vector.extract_strided_slice %5 {offsets = [0, 24], sizes = [8, 8], strides = [1, 1]} : vector<8x32xf32> to vector<8x8xf32>
    %56 = vector.extract_strided_slice %7 {offsets = [0, 24], sizes = [16, 8], strides = [1, 1]} : vector<16x32xf32> to vector<16x8xf32>
    %57 = vector.extract_strided_slice %9 {offsets = [0, 24], sizes = [16, 8], strides = [1, 1]} : vector<16x32xf32> to vector<16x8xf32>
    %cst_25 = arith.constant dense<0.000000e+00> : vector<8x16xf32>
    %58 = tpu.matmul %55, %56, %cst_25 {dimension_numbers = #tpu.dot_dimension_numbers<[1], [1], [0], [0], [0, 0, 1, 0], [], []>} : vector<8x8xf32>, vector<16x8xf32>, vector<8x16xf32> -> vector<8x16xf32>
    %cst_26 = arith.constant dense<0xFF800000> : vector<8xf32>
    %59 = vector.multi_reduction <maximumf>, %58, %cst_26 [1] : vector<8x16xf32> to vector<8xf32>
    %60 = vector.shape_cast %59 : vector<8xf32> to vector<8x1xf32>
    %61 = vector.broadcast %60 : vector<8x1xf32> to vector<8x16xf32>
    %62 = arith.subf %58, %61 : vector<8x16xf32>
    %63 = math.exp %62 : vector<8x16xf32>
    %cst_27 = arith.constant dense<0.000000e+00> : vector<8xf32>
    %64 = vector.multi_reduction <add>, %63, %cst_27 [1] : vector<8x16xf32> to vector<8xf32>
    %65 = vector.shape_cast %64 : vector<8xf32> to vector<8x1xf32>
    %66 = tpu.reciprocal %65 {approx = true} : vector<8x1xf32> -> vector<8x1xf32>
    %67 = vector.broadcast %66 : vector<8x1xf32> to vector<8x16xf32>
    %68 = arith.mulf %63, %67 : vector<8x16xf32>
    %cst_28 = arith.constant dense<0.000000e+00> : vector<8x8xf32>
    %69 = tpu.matmul %68, %57, %cst_28 {dimension_numbers = #tpu.dot_dimension_numbers<[1], [0], [0], [1], [0, 0, 1, 1], [], []>} : vector<8x16xf32>, vector<16x8xf32>, vector<8x8xf32> -> vector<8x8xf32>
    %70 = tpu.concatenate %24, %39, %54, %69 in 1 : vector<8x8xf32>, vector<8x8xf32>, vector<8x8xf32>, vector<8x8xf32> -> vector<8x32xf32>
    %c0_29 = arith.constant 0 : index
    %c0_30 = arith.constant 0 : index
    %c0_31 = arith.constant 0 : index
    %71 = vector.load %arg6[%c0_29, %c0_30, %c0_31] : memref<1x8x32xf32, #tpu.memory_space<vmem>>, vector<1x8x32xf32>
    %72 = vector.shape_cast %71 : vector<1x8x32xf32> to vector<8x32xf32>
    %73 = vector.shape_cast %70 : vector<8x32xf32> to vector<1x8x32xf32>
    tpu.vector_store %arg6[%c0_29, %c0_30, %c0_31], %73 {strides = array<i32>} : memref<1x8x32xf32, #tpu.memory_space<vmem>>, vector<1x8x32xf32>,
    return
  }
  func.func @transform_0(%arg0: i32) -> (i32, i32, i32) {
    %c0_i32 = arith.constant 0 : i32
    %c0_i32_0 = arith.constant 0 : i32
    %c0_i32_1 = arith.constant 0 : i32
    return %arg0, %c0_i32, %c0_i32_0 : i32, i32, i32
  }
  func.func @transform_1(%arg0: i32) -> (i32, i32, i32) {
    %c0_i32 = arith.constant 0 : i32
    %c0_i32_0 = arith.constant 0 : i32
    %c0_i32_1 = arith.constant 0 : i32
    return %arg0, %c0_i32, %c0_i32_0 : i32, i32, i32
  }
  func.func @transform_2(%arg0: i32) -> (i32, i32) {
    %c0_i32 = arith.constant 0 : i32
    %c0_i32_0 = arith.constant 0 : i32
    %c0_i32_1 = arith.constant 0 : i32
    return %c0_i32, %c0_i32_0 : i32, i32
  }
  func.func @transform_3(%arg0: i32) -> (i32, i32) {
    %c0_i32 = arith.constant 0 : i32
    %c0_i32_0 = arith.constant 0 : i32
    %c0_i32_1 = arith.constant 0 : i32
    return %c0_i32, %c0_i32_0 : i32, i32
  }
  func.func @transform_4(%arg0: i32) -> (i32, i32) {
    %c0_i32 = arith.constant 0 : i32
    %c0_i32_0 = arith.constant 0 : i32
    %c0_i32_1 = arith.constant 0 : i32
    return %c0_i32, %c0_i32_0 : i32, i32
  }
  func.func @transform_5(%arg0: i32) -> (i32, i32, i32) {
    %c0_i32 = arith.constant 0 : i32
    %c0_i32_0 = arith.constant 0 : i32
    %c0_i32_1 = arith.constant 0 : i32
    return %arg0, %c0_i32, %c0_i32_0 : i32, i32, i32
  }
}

</mosaic_0001>

<llo_original>
// kernel: tpu_custom_call.1
$region0: #{tpu_custom_call.1}
  #allocation0 [shape = 'u32[]', space=smem, size = 0x4, offset = 0x4, fixed_abs, tag = 'smem constant byte address 0x4 - core index']
  #allocation1 [shape = 'u32[144,128]{1,0:T(1,128)}', space=vmem, size = 0x12000, scoped, tag = 'internal scratch']
  %s0 = inlined_call_operand.hbm [shape: f32[2,8,16], index: 0, kind: input, shape index: {}]
  %s1 = inlined_call_operand.hbm [shape: f32[2,16,16], index: 1, kind: input, shape index: {}]
  %s2 = inlined_call_operand.hbm [shape: f32[16,32], index: 2, kind: input, shape index: {}]
  %s3 = inlined_call_operand.hbm [shape: f32[16,32], index: 3, kind: input, shape index: {}]
  %s4 = inlined_call_operand.hbm [shape: f32[16,32], index: 4, kind: input, shape index: {}]
  %s5 = inlined_call_operand.hbm [shape: f32[2,8,32], index: 5, kind: output, shape index: {}]
  %s6 = sld [smem:[#allocation0]]
  $region73: #{tpu_custom_call.1} parent=0
    _
  %s8 = ssub.s32 1, %s6
  %s9 = scalar_select 0, %s8, %s6
  $region1: #{tpu_custom_call.1} parent=0
    #allocation2 [shape = 'u8[8192]{0}', space=vmem, size = 0x2000, scoped, tag = 'input window, operand 0']
    #allocation3 [shape = 's32[2]{0}', space=sflag, size = 0x8, scoped, tag = 'scoped memory for tpu_custom_call.1']
    #allocation4 [shape = 's32[2]{0}', space=sflag, size = 0x8, scoped, tag = 'scoped memory for tpu_custom_call.1']
    #allocation5 [shape = 'u8[16384]{0}', space=vmem, size = 0x4000, scoped, tag = 'input window, operand 1']
    #allocation6 [shape = 's32[2]{0}', space=sflag, size = 0x8, scoped, tag = 'scoped memory for tpu_custom_call.1']
    #allocation7 [shape = 'u8[8192]{0}', space=vmem, size = 0x2000, scoped, tag = 'input window, operand 2, single buffered']
    #allocation8 [shape = 'u8[8192]{0}', space=vmem, size = 0x2000, scoped, tag = 'input window, operand 3, single buffered']
    #allocation9 [shape = 's32[1]{0}', space=sflag, size = 0x4, scoped, tag = 'scoped memory for tpu_custom_call.1']
    #allocation10 [shape = 'u8[8192]{0}', space=vmem, size = 0x2000, scoped, tag = 'input window, operand 4, single buffered']
    #allocation11 [shape = 'u8[8192]{0}', space=vmem, size = 0x2000, scoped, tag = 'output window, operand 0']
    %10 = vsyncpa [#allocation3], 0
    %s11 = scalar_lea.sflag [#allocation3], 1
    %12 = vsyncpa %s11, 0
    %13 = vsyncpa [#allocation6], 0
    %s14 = scalar_lea.sflag [#allocation6], 1
    %15 = vsyncpa %s14, 0
    %16 = vsyncpa [#allocation9], 0
    %17 = vsyncpa [#allocation4], 0
    %s18 = scalar_lea.sflag [#allocation4], 1
    %19 = vsyncpa %s18, 0
    loop: start=0, step=1, limit=4
    $region2: #{tpu_custom_call.1} parent=1 // loop_pre_header
      _
    $region3: #{tpu_custom_call.1} parent=1 // loop_header
      %s21 = sphi 0, %s25
      %p22 = scmp.ge.s32.totalorder %s21, 4
      %s31 = sphi 0, %s33
      %s34 = sphi 0, %s31
      %s35 = sphi 0, %s34
      %s51 = sphi 0, %s35
      %s57 = sphi 0, %s59
      %s60 = sphi 0, %s57
      %s61 = sphi 0, %s60
      %s77 = sphi 0, %s61
      %s81 = sphi 0, %s81
      %s83 = sphi 0, %s81
      %s84 = sphi 0, %s83
      %s98 = sphi 0, %s84
      %s102 = sphi 0, %s102
      %s104 = sphi 0, %s102
      %s105 = sphi 0, %s104
      %s119 = sphi 0, %s105
      %s123 = sphi 0, %s123
      %s125 = sphi 0, %s123
      %s126 = sphi 0, %s125
      %s140 = sphi 0, %s126
      %s146 = sphi 0, %s148
      %s149 = sphi 0, %s146
      %s150 = sphi 0, %s149
      %s166 = sphi 0, %s150
    $region4: #{tpu_custom_call.1} parent=1 // loop_header_branch
      %24 = sbr.rel (%p22) target = $region8
    $region5: #{tpu_custom_call.1} parent=1 // loop_body
      %s26 = ssub.s32 %s21, 1
      %s27 = ssub.s32 %s21, 2
      %s28 = sadd.s32 %s21, 1
      %s29 = ssub.s32 %s21, %s28
      %p30 = scmp.eq.s32.totalorder %s29, 0
      %s32 = sadd.s32 %s31, 1
      %s33 = scalar_select %p30, %s31, %s32
      %p36 = pneg %p30
      %p37 = scmp.eq.s32.totalorder %s21, 1
      %p38 = por %p36, %p37
      %p39 = scmp.ne.s32.totalorder %s31, %s34
      %p40 = scmp.eq.s32.totalorder %s21, 0
      %p41 = por %p39, %p40
      %p42 = scmp.ne.s32.totalorder %s31, %s34
      %p43 = scmp.eq.s32.totalorder %s26, 1
      %p44 = por %p42, %p43
      %p45 = scmp.ne.s32.totalorder %s34, %s35
      %p46 = scmp.eq.s32.totalorder %s26, 0
      %p47 = por %p45, %p46
      %p48 = scmp.ne.s32.totalorder %s34, %s35
      %p49 = scmp.eq.s32.totalorder %s27, 1
      %p50 = por %p48, %p49
      %p52 = scmp.ne.s32.totalorder %s35, %s51
      %p53 = scmp.eq.s32.totalorder %s27, 0
      %p54 = por %p52, %p53
      %s55 = ssub.s32 %s21, %s28
      %p56 = scmp.eq.s32.totalorder %s55, 0
      %s58 = sadd.s32 %s57, 1
      %s59 = scalar_select %p56, %s57, %s58
      %p62 = pneg %p56
      %p63 = scmp.eq.s32.totalorder %s21, 1
      %p64 = por %p62, %p63
      %p65 = scmp.ne.s32.totalorder %s57, %s60
      %p66 = scmp.eq.s32.totalorder %s21, 0
      %p67 = por %p65, %p66
      %p68 = scmp.ne.s32.totalorder %s57, %s60
      %p69 = scmp.eq.s32.totalorder %s26, 1
      %p70 = por %p68, %p69
      %p71 = scmp.ne.s32.totalorder %s60, %s61
      %p72 = scmp.eq.s32.totalorder %s26, 0
      %p73 = por %p71, %p72
      %p74 = scmp.ne.s32.totalorder %s60, %s61
      %p75 = scmp.eq.s32.totalorder %s27, 1
      %p76 = por %p74, %p75
      %p78 = scmp.ne.s32.totalorder %s61, %s77
      %p79 = scmp.eq.s32.totalorder %s27, 0
      %p80 = por %p78, %p79
      %s82 = sadd.s32 %s81, 1
      %p85 = scmp.eq.s32.totalorder %s21, 1
      %p86 = scmp.ne.s32.totalorder %s81, %s83
      %p87 = scmp.eq.s32.totalorder %s21, 0
      %p88 = por %p86, %p87
      %p89 = scmp.ne.s32.totalorder %s81, %s83
      %p90 = scmp.eq.s32.totalorder %s26, 1
      %p91 = por %p89, %p90
      %p92 = scmp.ne.s32.totalorder %s83, %s84
      %p93 = scmp.eq.s32.totalorder %s26, 0
      %p94 = por %p92, %p93
      %p95 = scmp.ne.s32.totalorder %s83, %s84
      %p96 = scmp.eq.s32.totalorder %s27, 1
      %p97 = por %p95, %p96
      %p99 = scmp.ne.s32.totalorder %s84, %s98
      %p100 = scmp.eq.s32.totalorder %s27, 0
      %p101 = por %p99, %p100
      %s103 = sadd.s32 %s102, 1
      %p106 = scmp.eq.s32.totalorder %s21, 1
      %p107 = scmp.ne.s32.totalorder %s102, %s104
      %p108 = scmp.eq.s32.totalorder %s21, 0
      %p109 = por %p107, %p108
      %p110 = scmp.ne.s32.totalorder %s102, %s104
      %p111 = scmp.eq.s32.totalorder %s26, 1
      %p112 = por %p110, %p111
      %p113 = scmp.ne.s32.totalorder %s104, %s105
      %p114 = scmp.eq.s32.totalorder %s26, 0
      %p115 = por %p113, %p114
      %p116 = scmp.ne.s32.totalorder %s104, %s105
      %p117 = scmp.eq.s32.totalorder %s27, 1
      %p118 = por %p116, %p117
      %p120 = scmp.ne.s32.totalorder %s105, %s119
      %p121 = scmp.eq.s32.totalorder %s27, 0
      %p122 = por %p120, %p121
      %s124 = sadd.s32 %s123, 1
      %p127 = scmp.eq.s32.totalorder %s21, 1
      %p128 = scmp.ne.s32.totalorder %s123, %s125
      %p129 = scmp.eq.s32.totalorder %s21, 0
      %p130 = por %p128, %p129
      %p131 = scmp.ne.s32.totalorder %s123, %s125
      %p132 = scmp.eq.s32.totalorder %s26, 1
      %p133 = por %p131, %p132
      %p134 = scmp.ne.s32.totalorder %s125, %s126
      %p135 = scmp.eq.s32.totalorder %s26, 0
      %p136 = por %p134, %p135
      %p137 = scmp.ne.s32.totalorder %s125, %s126
      %p138 = scmp.eq.s32.totalorder %s27, 1
      %p139 = por %p137, %p138
      %p141 = scmp.ne.s32.totalorder %s126, %s140
      %p142 = scmp.eq.s32.totalorder %s27, 0
      %p143 = por %p141, %p142
      %s144 = ssub.s32 %s21, %s28
      %p145 = scmp.eq.s32.totalorder %s144, 0
      %s147 = sadd.s32 %s146, 1
      %s148 = scalar_select %p145, %s146, %s147
      %p151 = pneg %p145
      %p152 = scmp.eq.s32.totalorder %s21, 1
      %p153 = por %p151, %p152
      %p154 = scmp.ne.s32.totalorder %s146, %s149
      %p155 = scmp.eq.s32.totalorder %s21, 0
      %p156 = por %p154, %p155
      %p157 = scmp.ne.s32.totalorder %s146, %s149
      %p158 = scmp.eq.s32.totalorder %s26, 1
      %p159 = por %p157, %p158
      %p160 = scmp.ne.s32.totalorder %s149, %s150
      %p161 = scmp.eq.s32.totalorder %s26, 0
      %p162 = por %p160, %p161
      %p163 = scmp.ne.s32.totalorder %s149, %s150
      %p164 = scmp.eq.s32.totalorder %s27, 1
      %p165 = por %p163, %p164
      %p167 = scmp.ne.s32.totalorder %s150, %s166
      %p168 = scmp.eq.s32.totalorder %s27, 0
      %p169 = por %p167, %p168
      %p170 = scmp.le.s32.totalorder 1, %s21
      %p171 = scmp.lt.s32.totalorder %s21, 3
      %p172 = pnand %p170, %p171
      %p173 = pneg %p172
      // Predicated region
      $region9: #{tpu_custom_call.1} parent=5 // pred_check
        _
      $region10: #{tpu_custom_call.1} parent=5 // pred_check_branch
        %175 = sbr.rel (%p172) target = $region12
      $region11: #{tpu_custom_call.1} parent=5 // pred_region
        %s176 = ssub.s32 %s21, 1
        // Predicated region
        $region13: #{tpu_custom_call.1} parent=11 // pred_check
          %p177 = pneg %p94
        $region14: #{tpu_custom_call.1} parent=11 // pred_check_branch
          %179 = sbr.rel (%p177) target = $region16
        $region15: #{tpu_custom_call.1} parent=11 // pred_region
          %s181 = ssub.s32 256, 256
          %182 = vsyncadd [#allocation6], %s181
          %s183 = sshll.u32 [#allocation7], 4
          %s184 = int_to_ptr.vmem [resolvable:$true] %s183
          %189 = dma.hbm_to_vmem [thread:$0]  %s2, 256, %s184, [#allocation6], 128, 128, 8
        $region16: #{tpu_custom_call.1} parent=11 // pred_fallthru
          _
        // Predicated region
        $region17: #{tpu_custom_call.1} parent=11 // pred_check
          %p190 = pneg %p115
        $region18: #{tpu_custom_call.1} parent=11 // pred_check_branch
          %192 = sbr.rel (%p190) target = $region20
        $region19: #{tpu_custom_call.1} parent=11 // pred_region
          %s194 = ssub.s32 256, 256
          %195 = vsyncadd [#allocation9], %s194
          %s196 = sshll.u32 [#allocation8], 4
          %s197 = int_to_ptr.vmem [resolvable:$true] %s196
          %202 = dma.hbm_to_vmem [thread:$0]  %s3, 256, %s197, [#allocation9], 128, 128, 8
        $region20: #{tpu_custom_call.1} parent=11 // pred_fallthru
          _
        // Predicated region
        $region21: #{tpu_custom_call.1} parent=11 // pred_check
          %p203 = pneg %p136
        $region22: #{tpu_custom_call.1} parent=11 // pred_check_branch
          %205 = sbr.rel (%p203) target = $region24
        $region23: #{tpu_custom_call.1} parent=11 // pred_region
          %s207 = ssub.s32 256, 256
          %208 = vsyncadd [#allocation9], %s207
          %s209 = sshll.u32 [#allocation10], 4
          %s210 = int_to_ptr.vmem [resolvable:$true] %s209
          %215 = dma.hbm_to_vmem [thread:$0]  %s4, 256, %s210, [#allocation9], 128, 128, 8
        $region24: #{tpu_custom_call.1} parent=11 // pred_fallthru
          _
      $region12: #{tpu_custom_call.1} parent=5 // pred_fallthru
        _
      %p216 = scmp.lt.s32.totalorder %s21, 2
      // Predicated region
      $region25: #{tpu_custom_call.1} parent=5 // pred_check
        %p217 = pneg %p216
      $region26: #{tpu_custom_call.1} parent=5 // pred_check_branch
        %219 = sbr.rel (%p217) target = $region28
      $region27: #{tpu_custom_call.1} parent=5 // pred_region
        // Predicated region
        $region29: #{tpu_custom_call.1} parent=27 // pred_check
          %p220 = pneg %p41
        $region30: #{tpu_custom_call.1} parent=27 // pred_check_branch
          %222 = sbr.rel (%p220) target = $region32
        $region31: #{tpu_custom_call.1} parent=27 // pred_region
          %s223 = sand.u32 %s31, 1
          %s224 = scalar_lea.sflag [#allocation3], %s223
          %s225 = sand.u32 %s31, 1
          %s226 = smul.addr %s225, 8
          %s227 = scalar_lea.vmem [#allocation2], %s226
          %s229 = ssub.s32 128, 128
          %230 = vsyncadd %s224, %s229
          %s231 = smul.addr %s21, 128
          %s232 = scalar_lea.hbm %s0, %s231
          %s234 = sshll.u32 %s227, 4
          %s235 = int_to_ptr.vmem [resolvable:$true] %s234
          %237 = dma.hbm_to_vmem [thread:$0]  %s232, 128, %s235, %s224
        $region32: #{tpu_custom_call.1} parent=27 // pred_fallthru
          _
        // Predicated region
        $region33: #{tpu_custom_call.1} parent=27 // pred_check
          %p238 = pneg %p67
        $region34: #{tpu_custom_call.1} parent=27 // pred_check_branch
          %240 = sbr.rel (%p238) target = $region36
        $region35: #{tpu_custom_call.1} parent=27 // pred_region
          %s241 = sand.u32 %s21, 1
          %s242 = scalar_lea.sflag [#allocation6], %s241
          %s243 = sand.u32 %s57, 1
          %s244 = smul.addr %s243, 16
          %s245 = scalar_lea.vmem [#allocation5], %s244
          %s247 = ssub.s32 256, 256
          %248 = vsyncadd %s242, %s247
          %s249 = smul.addr %s21, 2
          %s250 = smul.addr %s249, 128
          %s251 = scalar_lea.hbm %s1, %s250
          %s252 = sshll.u32 %s245, 4
          %s253 = int_to_ptr.vmem [resolvable:$true] %s252
          %258 = dma.hbm_to_vmem [thread:$0]  %s251, 256, %s253, %s242, 128, 128, 8
        $region36: #{tpu_custom_call.1} parent=27 // pred_fallthru
          _
      $region28: #{tpu_custom_call.1} parent=5 // pred_fallthru
        _
      %p259 = scmp.le.s32.totalorder 1, %s21
      %p260 = scmp.lt.s32.totalorder %s21, 3
      %p261 = pnand %p259, %p260
      %p262 = pneg %p261
      // Predicated region
      $region37: #{tpu_custom_call.1} parent=5 // pred_check
        _
      $region38: #{tpu_custom_call.1} parent=5 // pred_check_branch
        %264 = sbr.rel (%p261) target = $region40
      $region39: #{tpu_custom_call.1} parent=5 // pred_region
        %s265 = ssub.s32 %s21, 1
        %s266 = sand.u32 %s34, 1
        %s267 = scalar_lea.sflag [#allocation3], %s266
        %s268 = sand.u32 %s34, 1
        %s269 = smul.addr %s268, 8
        %s270 = scalar_lea.vmem [#allocation2], %s269
        // Predicated region
        $region41: #{tpu_custom_call.1} parent=39 // pred_check
          %p271 = pneg %p47
        $region42: #{tpu_custom_call.1} parent=39 // pred_check_branch
          %273 = sbr.rel (%p271) target = $region44
        $region43: #{tpu_custom_call.1} parent=39 // pred_region
          %274 = dma.done %s267, 128
        $region44: #{tpu_custom_call.1} parent=39 // pred_fallthru
          _
        %s275 = sand.u32 %s26, 1
        %s276 = scalar_lea.sflag [#allocation6], %s275
        %s277 = sand.u32 %s60, 1
        %s278 = smul.addr %s277, 16
        %s279 = scalar_lea.vmem [#allocation5], %s278
        // Predicated region
        $region45: #{tpu_custom_call.1} parent=39 // pred_check
          %p280 = pneg %p73
        $region46: #{tpu_custom_call.1} parent=39 // pred_check_branch
          %282 = sbr.rel (%p280) target = $region48
        $region47: #{tpu_custom_call.1} parent=39 // pred_region
          %283 = dma.done %s276, 256
        $region48: #{tpu_custom_call.1} parent=39 // pred_fallthru
          _
        // Predicated region
        $region49: #{tpu_custom_call.1} parent=39 // pred_check
          %p284 = pneg %p94
        $region50: #{tpu_custom_call.1} parent=39 // pred_check_branch
          %286 = sbr.rel (%p284) target = $region52
        $region51: #{tpu_custom_call.1} parent=39 // pred_region
          %287 = dma.done [#allocation6], 256
        $region52: #{tpu_custom_call.1} parent=39 // pred_fallthru
          _
        // Predicated region
        $region53: #{tpu_custom_call.1} parent=39 // pred_check
          %p288 = pneg %p115
        $region54: #{tpu_custom_call.1} parent=39 // pred_check_branch
          %290 = sbr.rel (%p288) target = $region56
        $region55: #{tpu_custom_call.1} parent=39 // pred_region
          %291 = dma.done [#allocation9], 256
        $region56: #{tpu_custom_call.1} parent=39 // pred_fallthru
          _
        // Predicated region
        $region57: #{tpu_custom_call.1} parent=39 // pred_check
          %p292 = pneg %p136
        $region58: #{tpu_custom_call.1} parent=39 // pred_check_branch
          %294 = sbr.rel (%p292) target = $region60
        $region59: #{tpu_custom_call.1} parent=39 // pred_region
          %295 = dma.done [#allocation9], 256
        $region60: #{tpu_custom_call.1} parent=39 // pred_fallthru
          _
        %s296 = sand.u32 %s34, 1
        %s297 = scalar_lea.sflag [#allocation3], %s296
        %s298 = sand.u32 %s34, 1
        %s299 = smul.addr %s298, 8
        %s300 = scalar_lea.vmem [#allocation2], %s299
        %p301 = pneg %p47
        %p302 = pneg %p44
        %s303 = sand.u32 %s26, 1
        %s304 = scalar_lea.sflag [#allocation6], %s303
        %s305 = sand.u32 %s60, 1
        %s306 = smul.addr %s305, 16
        %s307 = scalar_lea.vmem [#allocation5], %s306
        %p308 = pneg %p73
        %p309 = pneg %p70
        %p310 = pneg %p94
        %p311 = pneg %p91
        %p312 = pneg %p115
        %p313 = pneg %p112
        %p314 = pneg %p136
        %p315 = pneg %p133
        %p316 = pneg %p162
        %p317 = pneg %p159
        %s318 = sand.u32 %s149, 1
        %s319 = scalar_lea.sflag [#allocation4], %s318
        %s320 = sand.u32 %s149, 1
        %s321 = smul.addr %s320, 8
        %s322 = scalar_lea.vmem [#allocation11], %s321
        %v323 = vld [vmem:[%s270] sm:$0xff]
        %v324 = vld [vmem:[%s279] sm:$0xff]
        %v325 = vld [vmem:[%s279 + $0x8] sm:$0xff]
        %v326 = vld [vmem:[#allocation7] sm:$0xff]
        %v327 = vld [vmem:[#allocation7 + $0x8] sm:$0xff]
        %vm328 = vcmask 130048
        %v330 = vsel %vm328, %v323, 0
        %332 = vmatprep.subr.mxu0 0.0
        %333 = vmatpush1.msra.mxu0 %v326
        %334 = vmatprep.subr.mxu0 0.0
        %335 = vmatpush1.msra.mxu0 %v327
        %336 = vmatprep.subr.mxu0 0.0
        %337 = vmatpush1.msra.mxu0 0.0
        %338 = vmatprep.subr.mxu0 0.0
        %339 = vmatpush1.msra.mxu0 0.0
        %340 = vmatprep.subr.mxu0 0.0
        %341 = vmatpush1.msra.mxu0 0.0
        %342 = vmatprep.subr.mxu0 0.0
        %343 = vmatpush1.msra.mxu0 0.0
        %344 = vmatprep.subr.mxu0 0.0
        %345 = vmatpush1.msra.mxu0 0.0
        %346 = vmatprep.subr.mxu0 0.0
        %347 = vmatpush1.msra.mxu0 0.0
        %348 = vmatprep.subr.mxu0 0.0
        %349 = vmatpush1.msra.mxu0 0.0
        %350 = vmatprep.subr.mxu0 0.0
        %351 = vmatpush1.msra.mxu0 0.0
        %352 = vmatprep.subr.mxu0 0.0
        %353 = vmatpush1.msra.mxu0 0.0
        %354 = vmatprep.subr.mxu0 0.0
        %355 = vmatpush1.msra.mxu0 0.0
        %356 = vmatprep.subr.mxu0 0.0
        %357 = vmatpush1.msra.mxu0 0.0
        %358 = vmatprep.subr.mxu0 0.0
        %359 = vmatpush1.msra.mxu0 0.0
        %360 = vmatprep.subr.mxu0 0.0
        %361 = vmatpush1.msra.mxu0 0.0
        %362 = vmatprep.subr.mxu0 0.0
        %363 = vmatpush1.msra.mxu0 0.0
        %364 = vmatprep.subr.mxu0 0.0
        %365 = vmatpush1.msra.mxu0 0.0
        %366 = vmatprep.subr.mxu0 0.0
        %367 = vmatpush1.msra.mxu0 0.0
        %368 = vmatprep.subr.mxu0 0.0
        %369 = vmatpush1.msra.mxu0 0.0
        %370 = vmatprep.subr.mxu0 0.0
        %371 = vmatpush1.msra.mxu0 0.0
        %372 = vmatprep.subr.mxu0 0.0
        %373 = vmatpush1.msra.mxu0 0.0
        %374 = vmatprep.subr.mxu0 0.0
        %375 = vmatpush1.msra.mxu0 0.0
        %376 = vmatprep.subr.mxu0 0.0
        %377 = vmatpush1.msra.mxu0 0.0
        %378 = vmatprep.subr.mxu0 0.0
        %379 = vmatpush1.msra.mxu0 0.0
        %380 = vmatprep.subr.mxu0 0.0
        %381 = vmatpush1.msra.mxu0 0.0
        %382 = vmatprep.subr.mxu0 0.0
        %383 = vmatpush1.msra.mxu0 0.0
        %384 = vmatprep.subr.mxu0 0.0
        %385 = vmatpush1.msra.mxu0 0.0
        %386 = vmatprep.subr.mxu0 0.0
        %387 = vmatpush1.msra.mxu0 0.0
        %388 = vmatprep.subr.mxu0 0.0
        %389 = vmatpush1.msra.mxu0 0.0
        %390 = vmatprep.subr.mxu0 0.0
        %391 = vmatpush1.msra.mxu0 0.0
        %392 = vmatprep.subr.mxu0 0.0
        %393 = vmatpush1.msra.mxu0 0.0
        %394 = vmatprep.subr.mxu0 0.0
        %395 = vmatpush1.msra.mxu0 0.0
        %396 = vmatprep.mubr.f32.mxu0 0.0
        %397 = vmatmul.mubr.f32.gmra.mrb[0].mxu0 %v330
        %v398 = vpop.f32.mrb[0].mxu0
        %v399 = vadd.f32 0.0, %v398
        %v400 = vpop.f32.mrb[0].mxu0
        %401 = vdwg.mxu0
        %v402 = vld [vmem:[#allocation8] sm:$0xff]
        %v403 = vld [vmem:[#allocation8 + $0x8] sm:$0xff]
        %v405 = vsel %vm328, %v324, 0
        %v408 = vsel %vm328, %v325, 0
        %410 = vmatprep.subr.mxu0 0.0
        %411 = vmatpush1.msra.mxu0 %v402
        %412 = vmatprep.subr.mxu0 0.0
        %413 = vmatpush1.msra.mxu0 %v403
        %414 = vmatprep.subr.mxu0 0.0
        %415 = vmatpush1.msra.mxu0 0.0
        %416 = vmatprep.subr.mxu0 0.0
        %417 = vmatpush1.msra.mxu0 0.0
        %418 = vmatprep.subr.mxu0 0.0
        %419 = vmatpush1.msra.mxu0 0.0
        %420 = vmatprep.subr.mxu0 0.0
        %421 = vmatpush1.msra.mxu0 0.0
        %422 = vmatprep.subr.mxu0 0.0
        %423 = vmatpush1.msra.mxu0 0.0
        %424 = vmatprep.subr.mxu0 0.0
        %425 = vmatpush1.msra.mxu0 0.0
        %426 = vmatprep.subr.mxu0 0.0
        %427 = vmatpush1.msra.mxu0 0.0
        %428 = vmatprep.subr.mxu0 0.0
        %429 = vmatpush1.msra.mxu0 0.0
        %430 = vmatprep.subr.mxu0 0.0
        %431 = vmatpush1.msra.mxu0 0.0
        %432 = vmatprep.subr.mxu0 0.0
        %433 = vmatpush1.msra.mxu0 0.0
        %434 = vmatprep.subr.mxu0 0.0
        %435 = vmatpush1.msra.mxu0 0.0
        %436 = vmatprep.subr.mxu0 0.0
        %437 = vmatpush1.msra.mxu0 0.0
        %438 = vmatprep.subr.mxu0 0.0
        %439 = vmatpush1.msra.mxu0 0.0
        %440 = vmatprep.subr.mxu0 0.0
        %441 = vmatpush1.msra.mxu0 0.0
        %442 = vmatprep.subr.mxu0 0.0
        %443 = vmatpush1.msra.mxu0 0.0
        %444 = vmatprep.subr.mxu0 0.0
        %445 = vmatpush1.msra.mxu0 0.0
        %446 = vmatprep.subr.mxu0 0.0
        %447 = vmatpush1.msra.mxu0 0.0
        %448 = vmatprep.subr.mxu0 0.0
        %449 = vmatpush1.msra.mxu0 0.0
        %450 = vmatprep.subr.mxu0 0.0
        %451 = vmatpush1.msra.mxu0 0.0
        %452 = vmatprep.subr.mxu0 0.0
        %453 = vmatpush1.msra.mxu0 0.0
        %454 = vmatprep.subr.mxu0 0.0
        %455 = vmatpush1.msra.mxu0 0.0
        %456 = vmatprep.subr.mxu0 0.0
        %457 = vmatpush1.msra.mxu0 0.0
        %458 = vmatprep.subr.mxu0 0.0
        %459 = vmatpush1.msra.mxu0 0.0
        %460 = vmatprep.subr.mxu0 0.0
        %461 = vmatpush1.msra.mxu0 0.0
        %462 = vmatprep.subr.mxu0 0.0
        %463 = vmatpush1.msra.mxu0 0.0
        %464 = vmatprep.subr.mxu0 0.0
        %465 = vmatpush1.msra.mxu0 0.0
        %466 = vmatprep.subr.mxu0 0.0
        %467 = vmatpush1.msra.mxu0 0.0
        %468 = vmatprep.subr.mxu0 0.0
        %469 = vmatpush1.msra.mxu0 0.0
        %470 = vmatprep.subr.mxu0 0.0
        %471 = vmatpush1.msra.mxu0 0.0
        %472 = vmatprep.subr.mxu0 0.0
        %473 = vmatpush1.msra.mxu0 0.0
        %474 = vmatprep.mubr.f32.mxu0 0.0
        %475 = vmatmul.mubr.f32.gmra.mrb[0].mxu0 %v405
        %v476 = vpop.f32.mrb[0].mxu0
        %v477 = vadd.f32 0.0, %v476
        %v478 = vpop.f32.mrb[0].mxu0
        %479 = vmatprep.mubr.f32.mxu0 0.0
        %480 = vmatmul.mubr.f32.gmra.mrb[0].mxu0 %v408
        %v481 = vpop.f32.mrb[0].mxu0
        %v482 = vadd.f32 0.0, %v481
        %v483 = vpop.f32.mrb[0].mxu0
        %484 = vdwg.mxu0
        %v485 = vld [vmem:[#allocation10] sm:$0xff]
        %v486 = vld [vmem:[#allocation10 + $0x8] sm:$0xff]
        %487 = vmatprep.subr.mxu0 0.0
        %488 = vmatpush1.msra.mxu0 %v485
        %489 = vmatprep.subr.mxu0 0.0
        %490 = vmatpush1.msra.mxu0 %v486
        %491 = vmatprep.subr.mxu0 0.0
        %492 = vmatpush1.msra.mxu0 0.0
        %493 = vmatprep.subr.mxu0 0.0
        %494 = vmatpush1.msra.mxu0 0.0
        %495 = vmatprep.subr.mxu0 0.0
        %496 = vmatpush1.msra.mxu0 0.0
        %497 = vmatprep.subr.mxu0 0.0
        %498 = vmatpush1.msra.mxu0 0.0
        %499 = vmatprep.subr.mxu0 0.0
        %500 = vmatpush1.msra.mxu0 0.0
        %501 = vmatprep.subr.mxu0 0.0
        %502 = vmatpush1.msra.mxu0 0.0
        %503 = vmatprep.subr.mxu0 0.0
        %504 = vmatpush1.msra.mxu0 0.0
        %505 = vmatprep.subr.mxu0 0.0
        %506 = vmatpush1.msra.mxu0 0.0
        %507 = vmatprep.subr.mxu0 0.0
        %508 = vmatpush1.msra.mxu0 0.0
        %509 = vmatprep.subr.mxu0 0.0
        %510 = vmatpush1.msra.mxu0 0.0
        %511 = vmatprep.subr.mxu0 0.0
        %512 = vmatpush1.msra.mxu0 0.0
        %513 = vmatprep.subr.mxu0 0.0
        %514 = vmatpush1.msra.mxu0 0.0
        %515 = vmatprep.subr.mxu0 0.0
        %516 = vmatpush1.msra.mxu0 0.0
        %517 = vmatprep.subr.mxu0 0.0
        %518 = vmatpush1.msra.mxu0 0.0
        %519 = vmatprep.subr.mxu0 0.0
        %520 = vmatpush1.msra.mxu0 0.0
        %521 = vmatprep.subr.mxu0 0.0
        %522 = vmatpush1.msra.mxu0 0.0
        %523 = vmatprep.subr.mxu0 0.0
        %524 = vmatpush1.msra.mxu0 0.0
        %525 = vmatprep.subr.mxu0 0.0
        %526 = vmatpush1.msra.mxu0 0.0
        %527 = vmatprep.subr.mxu0 0.0
        %528 = vmatpush1.msra.mxu0 0.0
        %529 = vmatprep.subr.mxu0 0.0
        %530 = vmatpush1.msra.mxu0 0.0
        %531 = vmatprep.subr.mxu0 0.0
        %532 = vmatpush1.msra.mxu0 0.0
        %533 = vmatprep.subr.mxu0 0.0
        %534 = vmatpush1.msra.mxu0 0.0
        %535 = vmatprep.subr.mxu0 0.0
        %536 = vmatpush1.msra.mxu0 0.0
        %537 = vmatprep.subr.mxu0 0.0
        %538 = vmatpush1.msra.mxu0 0.0
        %539 = vmatprep.subr.mxu0 0.0
        %540 = vmatpush1.msra.mxu0 0.0
        %541 = vmatprep.subr.mxu0 0.0
        %542 = vmatpush1.msra.mxu0 0.0
        %543 = vmatprep.subr.mxu0 0.0
        %544 = vmatpush1.msra.mxu0 0.0
        %545 = vmatprep.subr.mxu0 0.0
        %546 = vmatpush1.msra.mxu0 0.0
        %547 = vmatprep.subr.mxu0 0.0
        %548 = vmatpush1.msra.mxu0 0.0
        %549 = vmatprep.subr.mxu0 0.0
        %550 = vmatpush1.msra.mxu0 0.0
        %551 = vmatprep.mubr.f32.mxu0 0.0
        %552 = vmatmul.mubr.f32.gmra.mrb[0].mxu0 %v405
        %v553 = vpop.f32.mrb[0].mxu0
        %v554 = vadd.f32 0.0, %v553
        %v555 = vpop.f32.mrb[0].mxu0
        %556 = vmatprep.mubr.f32.mxu0 0.0
        %557 = vmatmul.mubr.f32.gmra.mrb[0].mxu0 %v408
        %v558 = vpop.f32.mrb[0].mxu0
        %v559 = vadd.f32 0.0, %v558
        %v560 = vpop.f32.mrb[0].mxu0
        %561 = vdwg.mxu0
        %vm562 = vcmask 64512
        %v564 = vsel %vm562, %v399, 0
        %v567 = vsel %vm562, %v477, 0
        %v570 = vsel %vm562, %v482, 0
        %572 = vmatprep.subr.mxu0 0.0
        %573 = vmatpush1.xpose.msra.mxu0 %v567
        %574 = vmatprep.subr.mxu0 0.0
        %575 = vmatpush1.xpose.msra.mxu0 %v570
        %576 = vmatprep.subr.mxu0 0.0
        %577 = vmatpush1.xpose.msra.mxu0 0.0
        %578 = vmatprep.subr.mxu0 0.0
        %579 = vmatpush1.xpose.msra.mxu0 0.0
        %580 = vmatprep.subr.mxu0 0.0
        %581 = vmatpush1.xpose.msra.mxu0 0.0
        %582 = vmatprep.subr.mxu0 0.0
        %583 = vmatpush1.xpose.msra.mxu0 0.0
        %584 = vmatprep.subr.mxu0 0.0
        %585 = vmatpush1.xpose.msra.mxu0 0.0
        %586 = vmatprep.subr.mxu0 0.0
        %587 = vmatpush1.xpose.msra.mxu0 0.0
        %588 = vmatprep.subr.mxu0 0.0
        %589 = vmatpush1.xpose.msra.mxu0 0.0
        %590 = vmatprep.subr.mxu0 0.0
        %591 = vmatpush1.xpose.msra.mxu0 0.0
        %592 = vmatprep.subr.mxu0 0.0
        %593 = vmatpush1.xpose.msra.mxu0 0.0
        %594 = vmatprep.subr.mxu0 0.0
        %595 = vmatpush1.xpose.msra.mxu0 0.0
        %596 = vmatprep.subr.mxu0 0.0
        %597 = vmatpush1.xpose.msra.mxu0 0.0
        %598 = vmatprep.subr.mxu0 0.0
        %599 = vmatpush1.xpose.msra.mxu0 0.0
        %600 = vmatprep.subr.mxu0 0.0
        %601 = vmatpush1.xpose.msra.mxu0 0.0
        %602 = vmatprep.subr.mxu0 0.0
        %603 = vmatpush1.xpose.msra.mxu0 0.0
        %604 = vmatprep.subr.mxu0 0.0
        %605 = vmatpush1.xpose.msra.mxu0 0.0
        %606 = vmatprep.subr.mxu0 0.0
        %607 = vmatpush1.xpose.msra.mxu0 0.0
        %608 = vmatprep.subr.mxu0 0.0
        %609 = vmatpush1.xpose.msra.mxu0 0.0
        %610 = vmatprep.subr.mxu0 0.0
        %611 = vmatpush1.xpose.msra.mxu0 0.0
        %612 = vmatprep.subr.mxu0 0.0
        %613 = vmatpush1.xpose.msra.mxu0 0.0
        %614 = vmatprep.subr.mxu0 0.0
        %615 = vmatpush1.xpose.msra.mxu0 0.0
        %616 = vmatprep.subr.mxu0 0.0
        %617 = vmatpush1.xpose.msra.mxu0 0.0
        %618 = vmatprep.subr.mxu0 0.0
        %619 = vmatpush1.xpose.msra.mxu0 0.0
        %620 = vmatprep.subr.mxu0 0.0
        %621 = vmatpush1.xpose.msra.mxu0 0.0
        %622 = vmatprep.subr.mxu0 0.0
        %623 = vmatpush1.xpose.msra.mxu0 0.0
        %624 = vmatprep.subr.mxu0 0.0
        %625 = vmatpush1.xpose.msra.mxu0 0.0
        %626 = vmatprep.subr.mxu0 0.0
        %627 = vmatpush1.xpose.msra.mxu0 0.0
        %628 = vmatprep.subr.mxu0 0.0
        %629 = vmatpush1.xpose.msra.mxu0 0.0
        %630 = vmatprep.subr.mxu0 0.0
        %631 = vmatpush1.xpose.msra.mxu0 0.0
        %632 = vmatprep.subr.mxu0 0.0
        %633 = vmatpush1.xpose.msra.mxu0 0.0
        %634 = vmatprep.subr.mxu0 0.0
        %635 = vmatpush1.xpose.msra.mxu0 0.0
        %636 = vmatprep.mubr.f32.mxu0 0.0
        %637 = vmatmul.mubr.f32.gmra.mrb[0].mxu0 %v564
        %v638 = vpop.f32.mrb[0].mxu0
        %v639 = vadd.f32 0.0, %v638
        %v640 = vpop.f32.mrb[0].mxu0
        %641 = vdwg.mxu0
        %v642 = vsel %vm328, %v639, -inf
        %643 = vmax.xlane.f32.xlu0 %v642
        %v644 = vpop.xlane.xlu0 %643
        %v645 = vsub.f32 %v639, %v644
        %v646 = vmul.f32 %v645, 1.442695
        %v647 = vpow.pop %v646
        %v648 = vsel %vm328, %v647, 0.0
        %649 = vadd.xlane.f32.xlu0 %v648
        %v650 = vpop.xlane.xlu0 %649
        %v651 = vrcp.pop %v650
        %v652 = vmul.f32 %v647, %v651
        %v654 = vsel %vm328, %v652, 0
        %656 = vmatprep.subr.mxu0 0.0
        %657 = vmatpush1.msra.mxu0 %v554
        %658 = vmatprep.subr.mxu0 0.0
        %659 = vmatpush1.msra.mxu0 %v559
        %660 = vmatprep.subr.mxu0 0.0
        %661 = vmatpush1.msra.mxu0 0.0
        %662 = vmatprep.subr.mxu0 0.0
        %663 = vmatpush1.msra.mxu0 0.0
        %664 = vmatprep.subr.mxu0 0.0
        %665 = vmatpush1.msra.mxu0 0.0
        %666 = vmatprep.subr.mxu0 0.0
        %667 = vmatpush1.msra.mxu0 0.0
        %668 = vmatprep.subr.mxu0 0.0
        %669 = vmatpush1.msra.mxu0 0.0
        %670 = vmatprep.subr.mxu0 0.0
        %671 = vmatpush1.msra.mxu0 0.0
        %672 = vmatprep.subr.mxu0 0.0
        %673 = vmatpush1.msra.mxu0 0.0
        %674 = vmatprep.subr.mxu0 0.0
        %675 = vmatpush1.msra.mxu0 0.0
        %676 = vmatprep.subr.mxu0 0.0
        %677 = vmatpush1.msra.mxu0 0.0
        %678 = vmatprep.subr.mxu0 0.0
        %679 = vmatpush1.msra.mxu0 0.0
        %680 = vmatprep.subr.mxu0 0.0
        %681 = vmatpush1.msra.mxu0 0.0
        %682 = vmatprep.subr.mxu0 0.0
        %683 = vmatpush1.msra.mxu0 0.0
        %684 = vmatprep.subr.mxu0 0.0
        %685 = vmatpush1.msra.mxu0 0.0
        %686 = vmatprep.subr.mxu0 0.0
        %687 = vmatpush1.msra.mxu0 0.0
        %688 = vmatprep.subr.mxu0 0.0
        %689 = vmatpush1.msra.mxu0 0.0
        %690 = vmatprep.subr.mxu0 0.0
        %691 = vmatpush1.msra.mxu0 0.0
        %692 = vmatprep.subr.mxu0 0.0
        %693 = vmatpush1.msra.mxu0 0.0
        %694 = vmatprep.subr.mxu0 0.0
        %695 = vmatpush1.msra.mxu0 0.0
        %696 = vmatprep.subr.mxu0 0.0
        %697 = vmatpush1.msra.mxu0 0.0
        %698 = vmatprep.subr.mxu0 0.0
        %699 = vmatpush1.msra.mxu0 0.0
        %700 = vmatprep.subr.mxu0 0.0
        %701 = vmatpush1.msra.mxu0 0.0
        %702 = vmatprep.subr.mxu0 0.0
        %703 = vmatpush1.msra.mxu0 0.0
        %704 = vmatprep.subr.mxu0 0.0
        %705 = vmatpush1.msra.mxu0 0.0
        %706 = vmatprep.subr.mxu0 0.0
        %707 = vmatpush1.msra.mxu0 0.0
        %708 = vmatprep.subr.mxu0 0.0
        %709 = vmatpush1.msra.mxu0 0.0
        %710 = vmatprep.subr.mxu0 0.0
        %711 = vmatpush1.msra.mxu0 0.0
        %712 = vmatprep.subr.mxu0 0.0
        %713 = vmatpush1.msra.mxu0 0.0
        %714 = vmatprep.subr.mxu0 0.0
        %715 = vmatpush1.msra.mxu0 0.0
        %716 = vmatprep.subr.mxu0 0.0
        %717 = vmatpush1.msra.mxu0 0.0
        %718 = vmatprep.subr.mxu0 0.0
        %719 = vmatpush1.msra.mxu0 0.0
        %720 = vmatprep.mubr.f32.mxu0 0.0
        %721 = vmatmul.mubr.f32.gmra.mrb[0].mxu0 %v654
        %v722 = vpop.f32.mrb[0].mxu0
        %v723 = vadd.f32 0.0, %v722
        %v724 = vpop.f32.mrb[0].mxu0
        %725 = vdwg.mxu0
        %726 = vrot.lane.b32.xlu0 %v399, 120
        %v727 = vpop.permute.xlu0 %726
        %728 = vrot.lane.b32.xlu0 %v477, 120
        %v729 = vpop.permute.xlu0 %728
        %730 = vrot.lane.b32.xlu0 %v482, 120
        %v731 = vpop.permute.xlu0 %730
        %v732 = vsel %vm562, %v727, 0
        %v734 = vsel %vm562, %v729, 0
        %v736 = vsel %vm562, %v731, 0
        %738 = vmatprep.subr.mxu0 0.0
        %739 = vmatpush1.xpose.msra.mxu0 %v734
        %740 = vmatprep.subr.mxu0 0.0
        %741 = vmatpush1.xpose.msra.mxu0 %v736
        %742 = vmatprep.subr.mxu0 0.0
        %743 = vmatpush1.xpose.msra.mxu0 0.0
        %744 = vmatprep.subr.mxu0 0.0
        %745 = vmatpush1.xpose.msra.mxu0 0.0
        %746 = vmatprep.subr.mxu0 0.0
        %747 = vmatpush1.xpose.msra.mxu0 0.0
        %748 = vmatprep.subr.mxu0 0.0
        %749 = vmatpush1.xpose.msra.mxu0 0.0
        %750 = vmatprep.subr.mxu0 0.0
        %751 = vmatpush1.xpose.msra.mxu0 0.0
        %752 = vmatprep.subr.mxu0 0.0
        %753 = vmatpush1.xpose.msra.mxu0 0.0
        %754 = vmatprep.subr.mxu0 0.0
        %755 = vmatpush1.xpose.msra.mxu0 0.0
        %756 = vmatprep.subr.mxu0 0.0
        %757 = vmatpush1.xpose.msra.mxu0 0.0
        %758 = vmatprep.subr.mxu0 0.0
        %759 = vmatpush1.xpose.msra.mxu0 0.0
        %760 = vmatprep.subr.mxu0 0.0
        %761 = vmatpush1.xpose.msra.mxu0 0.0
        %762 = vmatprep.subr.mxu0 0.0
        %763 = vmatpush1.xpose.msra.mxu0 0.0
        %764 = vmatprep.subr.mxu0 0.0
        %765 = vmatpush1.xpose.msra.mxu0 0.0
        %766 = vmatprep.subr.mxu0 0.0
        %767 = vmatpush1.xpose.msra.mxu0 0.0
        %768 = vmatprep.subr.mxu0 0.0
        %769 = vmatpush1.xpose.msra.mxu0 0.0
        %770 = vmatprep.subr.mxu0 0.0
        %771 = vmatpush1.xpose.msra.mxu0 0.0
        %772 = vmatprep.subr.mxu0 0.0
        %773 = vmatpush1.xpose.msra.mxu0 0.0
        %774 = vmatprep.subr.mxu0 0.0
        %775 = vmatpush1.xpose.msra.mxu0 0.0
        %776 = vmatprep.subr.mxu0 0.0
        %777 = vmatpush1.xpose.msra.mxu0 0.0
        %778 = vmatprep.subr.mxu0 0.0
        %779 = vmatpush1.xpose.msra.mxu0 0.0
        %780 = vmatprep.subr.mxu0 0.0
        %781 = vmatpush1.xpose.msra.mxu0 0.0
        %782 = vmatprep.subr.mxu0 0.0
        %783 = vmatpush1.xpose.msra.mxu0 0.0
        %784 = vmatprep.subr.mxu0 0.0
        %785 = vmatpush1.xpose.msra.mxu0 0.0
        %786 = vmatprep.subr.mxu0 0.0
        %787 = vmatpush1.xpose.msra.mxu0 0.0
        %788 = vmatprep.subr.mxu0 0.0
        %789 = vmatpush1.xpose.msra.mxu0 0.0
        %790 = vmatprep.subr.mxu0 0.0
        %791 = vmatpush1.xpose.msra.mxu0 0.0
        %792 = vmatprep.subr.mxu0 0.0
        %793 = vmatpush1.xpose.msra.mxu0 0.0
        %794 = vmatprep.subr.mxu0 0.0
        %795 = vmatpush1.xpose.msra.mxu0 0.0
        %796 = vmatprep.subr.mxu0 0.0
        %797 = vmatpush1.xpose.msra.mxu0 0.0
        %798 = vmatprep.subr.mxu0 0.0
        %799 = vmatpush1.xpose.msra.mxu0 0.0
        %800 = vmatprep.subr.mxu0 0.0
        %801 = vmatpush1.xpose.msra.mxu0 0.0
        %802 = vmatprep.mubr.f32.mxu0 0.0
        %803 = vmatmul.mubr.f32.gmra.mrb[0].mxu0 %v732
        %v804 = vpop.f32.mrb[0].mxu0
        %v805 = vadd.f32 0.0, %v804
        %v806 = vpop.f32.mrb[0].mxu0
        %807 = vdwg.mxu0
        %v808 = vsel %vm328, %v805, -inf
        %809 = vmax.xlane.f32.xlu0 %v808
        %v810 = vpop.xlane.xlu0 %809
        %v811 = vsub.f32 %v805, %v810
        %v812 = vmul.f32 %v811, 1.442695
        %v813 = vpow.pop %v812
        %v814 = vsel %vm328, %v813, 0.0
        %815 = vadd.xlane.f32.xlu0 %v814
        %v816 = vpop.xlane.xlu0 %815
        %v817 = vrcp.pop %v816
        %v818 = vmul.f32 %v813, %v817
        %821 = vrot.lane.b32.xlu0 %v554, 120
        %v822 = vpop.permute.xlu0 %821
        %823 = vrot.lane.b32.xlu0 %v559, 120
        %v824 = vpop.permute.xlu0 %823
        %v828 = vsel %vm328, %v818, 0
        %830 = vmatprep.subr.mxu0 0.0
        %831 = vmatpush1.msra.mxu0 %v822
        %832 = vmatprep.subr.mxu0 0.0
        %833 = vmatpush1.msra.mxu0 %v824
        %834 = vmatprep.subr.mxu0 0.0
        %835 = vmatpush1.msra.mxu0 0.0
        %836 = vmatprep.subr.mxu0 0.0
        %837 = vmatpush1.msra.mxu0 0.0
        %838 = vmatprep.subr.mxu0 0.0
        %839 = vmatpush1.msra.mxu0 0.0
        %840 = vmatprep.subr.mxu0 0.0
        %841 = vmatpush1.msra.mxu0 0.0
        %842 = vmatprep.subr.mxu0 0.0
        %843 = vmatpush1.msra.mxu0 0.0
        %844 = vmatprep.subr.mxu0 0.0
        %845 = vmatpush1.msra.mxu0 0.0
        %846 = vmatprep.subr.mxu0 0.0
        %847 = vmatpush1.msra.mxu0 0.0
        %848 = vmatprep.subr.mxu0 0.0
        %849 = vmatpush1.msra.mxu0 0.0
        %850 = vmatprep.subr.mxu0 0.0
        %851 = vmatpush1.msra.mxu0 0.0
        %852 = vmatprep.subr.mxu0 0.0
        %853 = vmatpush1.msra.mxu0 0.0
        %854 = vmatprep.subr.mxu0 0.0
        %855 = vmatpush1.msra.mxu0 0.0
        %856 = vmatprep.subr.mxu0 0.0
        %857 = vmatpush1.msra.mxu0 0.0
        %858 = vmatprep.subr.mxu0 0.0
        %859 = vmatpush1.msra.mxu0 0.0
        %860 = vmatprep.subr.mxu0 0.0
        %861 = vmatpush1.msra.mxu0 0.0
        %862 = vmatprep.subr.mxu0 0.0
        %863 = vmatpush1.msra.mxu0 0.0
        %864 = vmatprep.subr.mxu0 0.0
        %865 = vmatpush1.msra.mxu0 0.0
        %866 = vmatprep.subr.mxu0 0.0
        %867 = vmatpush1.msra.mxu0 0.0
        %868 = vmatprep.subr.mxu0 0.0
        %869 = vmatpush1.msra.mxu0 0.0
        %870 = vmatprep.subr.mxu0 0.0
        %871 = vmatpush1.msra.mxu0 0.0
        %872 = vmatprep.subr.mxu0 0.0
        %873 = vmatpush1.msra.mxu0 0.0
        %874 = vmatprep.subr.mxu0 0.0
        %875 = vmatpush1.msra.mxu0 0.0
        %876 = vmatprep.subr.mxu0 0.0
        %877 = vmatpush1.msra.mxu0 0.0
        %878 = vmatprep.subr.mxu0 0.0
        %879 = vmatpush1.msra.mxu0 0.0
        %880 = vmatprep.subr.mxu0 0.0
        %881 = vmatpush1.msra.mxu0 0.0
        %882 = vmatprep.subr.mxu0 0.0
        %883 = vmatpush1.msra.mxu0 0.0
        %884 = vmatprep.subr.mxu0 0.0
        %885 = vmatpush1.msra.mxu0 0.0
        %886 = vmatprep.subr.mxu0 0.0
        %887 = vmatpush1.msra.mxu0 0.0
        %888 = vmatprep.subr.mxu0 0.0
        %889 = vmatpush1.msra.mxu0 0.0
        %890 = vmatprep.subr.mxu0 0.0
        %891 = vmatpush1.msra.mxu0 0.0
        %892 = vmatprep.subr.mxu0 0.0
        %893 = vmatpush1.msra.mxu0 0.0
        %894 = vmatprep.mubr.f32.mxu0 0.0
        %895 = vmatmul.mubr.f32.gmra.mrb[0].mxu0 %v828
        %v896 = vpop.f32.mrb[0].mxu0
        %v897 = vadd.f32 0.0, %v896
        %v898 = vpop.f32.mrb[0].mxu0
        %899 = vdwg.mxu0
        %900 = vrot.lane.b32.xlu0 %v399, 112
        %v901 = vpop.permute.xlu0 %900
        %902 = vrot.lane.b32.xlu0 %v477, 112
        %v903 = vpop.permute.xlu0 %902
        %904 = vrot.lane.b32.xlu0 %v482, 112
        %v905 = vpop.permute.xlu0 %904
        %v906 = vsel %vm562, %v901, 0
        %v908 = vsel %vm562, %v903, 0
        %v910 = vsel %vm562, %v905, 0
        %912 = vmatprep.subr.mxu0 0.0
        %913 = vmatpush1.xpose.msra.mxu0 %v908
        %914 = vmatprep.subr.mxu0 0.0
        %915 = vmatpush1.xpose.msra.mxu0 %v910
        %916 = vmatprep.subr.mxu0 0.0
        %917 = vmatpush1.xpose.msra.mxu0 0.0
        %918 = vmatprep.subr.mxu0 0.0
        %919 = vmatpush1.xpose.msra.mxu0 0.0
        %920 = vmatprep.subr.mxu0 0.0
        %921 = vmatpush1.xpose.msra.mxu0 0.0
        %922 = vmatprep.subr.mxu0 0.0
        %923 = vmatpush1.xpose.msra.mxu0 0.0
        %924 = vmatprep.subr.mxu0 0.0
        %925 = vmatpush1.xpose.msra.mxu0 0.0
        %926 = vmatprep.subr.mxu0 0.0
        %927 = vmatpush1.xpose.msra.mxu0 0.0
        %928 = vmatprep.subr.mxu0 0.0
        %929 = vmatpush1.xpose.msra.mxu0 0.0
        %930 = vmatprep.subr.mxu0 0.0
        %931 = vmatpush1.xpose.msra.mxu0 0.0
        %932 = vmatprep.subr.mxu0 0.0
        %933 = vmatpush1.xpose.msra.mxu0 0.0
        %934 = vmatprep.subr.mxu0 0.0
        %935 = vmatpush1.xpose.msra.mxu0 0.0
        %936 = vmatprep.subr.mxu0 0.0
        %937 = vmatpush1.xpose.msra.mxu0 0.0
        %938 = vmatprep.subr.mxu0 0.0
        %939 = vmatpush1.xpose.msra.mxu0 0.0
        %940 = vmatprep.subr.mxu0 0.0
        %941 = vmatpush1.xpose.msra.mxu0 0.0
        %942 = vmatprep.subr.mxu0 0.0
        %943 = vmatpush1.xpose.msra.mxu0 0.0
        %944 = vmatprep.subr.mxu0 0.0
        %945 = vmatpush1.xpose.msra.mxu0 0.0
        %946 = vmatprep.subr.mxu0 0.0
        %947 = vmatpush1.xpose.msra.mxu0 0.0
        %948 = vmatprep.subr.mxu0 0.0
        %949 = vmatpush1.xpose.msra.mxu0 0.0
        %950 = vmatprep.subr.mxu0 0.0
        %951 = vmatpush1.xpose.msra.mxu0 0.0
        %952 = vmatprep.subr.mxu0 0.0
        %953 = vmatpush1.xpose.msra.mxu0 0.0
        %954 = vmatprep.subr.mxu0 0.0
        %955 = vmatpush1.xpose.msra.mxu0 0.0
        %956 = vmatprep.subr.mxu0 0.0
        %957 = vmatpush1.xpose.msra.mxu0 0.0
        %958 = vmatprep.subr.mxu0 0.0
        %959 = vmatpush1.xpose.msra.mxu0 0.0
        %960 = vmatprep.subr.mxu0 0.0
        %961 = vmatpush1.xpose.msra.mxu0 0.0
        %962 = vmatprep.subr.mxu0 0.0
        %963 = vmatpush1.xpose.msra.mxu0 0.0
        %964 = vmatprep.subr.mxu0 0.0
        %965 = vmatpush1.xpose.msra.mxu0 0.0
        %966 = vmatprep.subr.mxu0 0.0
        %967 = vmatpush1.xpose.msra.mxu0 0.0
        %968 = vmatprep.subr.mxu0 0.0
        %969 = vmatpush1.xpose.msra.mxu0 0.0
        %970 = vmatprep.subr.mxu0 0.0
        %971 = vmatpush1.xpose.msra.mxu0 0.0
        %972 = vmatprep.subr.mxu0 0.0
        %973 = vmatpush1.xpose.msra.mxu0 0.0
        %974 = vmatprep.subr.mxu0 0.0
        %975 = vmatpush1.xpose.msra.mxu0 0.0
        %976 = vmatprep.mubr.f32.mxu0 0.0
        %977 = vmatmul.mubr.f32.gmra.mrb[0].mxu0 %v906
        %v978 = vpop.f32.mrb[0].mxu0
        %v979 = vadd.f32 0.0, %v978
        %v980 = vpop.f32.mrb[0].mxu0
        %981 = vdwg.mxu0
        %v982 = vsel %vm328, %v979, -inf
        %983 = vmax.xlane.f32.xlu0 %v982
        %v984 = vpop.xlane.xlu0 %983
        %v985 = vsub.f32 %v979, %v984
        %v986 = vmul.f32 %v985, 1.442695
        %v987 = vpow.pop %v986
        %v988 = vsel %vm328, %v987, 0.0
        %989 = vadd.xlane.f32.xlu0 %v988
        %v990 = vpop.xlane.xlu0 %989
        %v991 = vrcp.pop %v990
        %v992 = vmul.f32 %v987, %v991
        %993 = vrot.lane.b32.xlu0 %v554, 112
        %v994 = vpop.permute.xlu0 %993
        %995 = vrot.lane.b32.xlu0 %v559, 112
        %v996 = vpop.permute.xlu0 %995
        %v1000 = vsel %vm328, %v992, 0
        %1002 = vmatprep.subr.mxu0 0.0
        %1003 = vmatpush1.msra.mxu0 %v994
        %1004 = vmatprep.subr.mxu0 0.0
        %1005 = vmatpush1.msra.mxu0 %v996
        %1006 = vmatprep.subr.mxu0 0.0
        %1007 = vmatpush1.msra.mxu0 0.0
        %1008 = vmatprep.subr.mxu0 0.0
        %1009 = vmatpush1.msra.mxu0 0.0
        %1010 = vmatprep.subr.mxu0 0.0
        %1011 = vmatpush1.msra.mxu0 0.0
        %1012 = vmatprep.subr.mxu0 0.0
        %1013 = vmatpush1.msra.mxu0 0.0
        %1014 = vmatprep.subr.mxu0 0.0
        %1015 = vmatpush1.msra.mxu0 0.0
        %1016 = vmatprep.subr.mxu0 0.0
        %1017 = vmatpush1.msra.mxu0 0.0
        %1018 = vmatprep.subr.mxu0 0.0
        %1019 = vmatpush1.msra.mxu0 0.0
        %1020 = vmatprep.subr.mxu0 0.0
        %1021 = vmatpush1.msra.mxu0 0.0
        %1022 = vmatprep.subr.mxu0 0.0
        %1023 = vmatpush1.msra.mxu0 0.0
        %1024 = vmatprep.subr.mxu0 0.0
        %1025 = vmatpush1.msra.mxu0 0.0
        %1026 = vmatprep.subr.mxu0 0.0
        %1027 = vmatpush1.msra.mxu0 0.0
        %1028 = vmatprep.subr.mxu0 0.0
        %1029 = vmatpush1.msra.mxu0 0.0
        %1030 = vmatprep.subr.mxu0 0.0
        %1031 = vmatpush1.msra.mxu0 0.0
        %1032 = vmatprep.subr.mxu0 0.0
        %1033 = vmatpush1.msra.mxu0 0.0
        %1034 = vmatprep.subr.mxu0 0.0
        %1035 = vmatpush1.msra.mxu0 0.0
        %1036 = vmatprep.subr.mxu0 0.0
        %1037 = vmatpush1.msra.mxu0 0.0
        %1038 = vmatprep.subr.mxu0 0.0
        %1039 = vmatpush1.msra.mxu0 0.0
        %1040 = vmatprep.subr.mxu0 0.0
        %1041 = vmatpush1.msra.mxu0 0.0
        %1042 = vmatprep.subr.mxu0 0.0
        %1043 = vmatpush1.msra.mxu0 0.0
        %1044 = vmatprep.subr.mxu0 0.0
        %1045 = vmatpush1.msra.mxu0 0.0
        %1046 = vmatprep.subr.mxu0 0.0
        %1047 = vmatpush1.msra.mxu0 0.0
        %1048 = vmatprep.subr.mxu0 0.0
        %1049 = vmatpush1.msra.mxu0 0.0
        %1050 = vmatprep.subr.mxu0 0.0
        %1051 = vmatpush1.msra.mxu0 0.0
        %1052 = vmatprep.subr.mxu0 0.0
        %1053 = vmatpush1.msra.mxu0 0.0
        %1054 = vmatprep.subr.mxu0 0.0
        %1055 = vmatpush1.msra.mxu0 0.0
        %1056 = vmatprep.subr.mxu0 0.0
        %1057 = vmatpush1.msra.mxu0 0.0
        %1058 = vmatprep.subr.mxu0 0.0
        %1059 = vmatpush1.msra.mxu0 0.0
        %1060 = vmatprep.subr.mxu0 0.0
        %1061 = vmatpush1.msra.mxu0 0.0
        %1062 = vmatprep.subr.mxu0 0.0
        %1063 = vmatpush1.msra.mxu0 0.0
        %1064 = vmatprep.subr.mxu0 0.0
        %1065 = vmatpush1.msra.mxu0 0.0
        %1066 = vmatprep.mubr.f32.mxu0 0.0
        %1067 = vmatmul.mubr.f32.gmra.mrb[0].mxu0 %v1000
        %v1068 = vpop.f32.mrb[0].mxu0
        %v1069 = vadd.f32 0.0, %v1068
        %v1070 = vpop.f32.mrb[0].mxu0
        %1071 = vdwg.mxu0
        %1072 = vrot.lane.b32.xlu0 %v399, 104
        %v1073 = vpop.permute.xlu0 %1072
        %1074 = vrot.lane.b32.xlu0 %v477, 104
        %v1075 = vpop.permute.xlu0 %1074
        %1076 = vrot.lane.b32.xlu0 %v482, 104
        %v1077 = vpop.permute.xlu0 %1076
        %v1078 = vsel %vm562, %v1073, 0
        %v1080 = vsel %vm562, %v1075, 0
        %v1082 = vsel %vm562, %v1077, 0
        %1084 = vmatprep.subr.mxu0 0.0
        %1085 = vmatpush1.xpose.msra.mxu0 %v1080
        %1086 = vmatprep.subr.mxu0 0.0
        %1087 = vmatpush1.xpose.msra.mxu0 %v1082
        %1088 = vmatprep.subr.mxu0 0.0
        %1089 = vmatpush1.xpose.msra.mxu0 0.0
        %1090 = vmatprep.subr.mxu0 0.0
        %1091 = vmatpush1.xpose.msra.mxu0 0.0
        %1092 = vmatprep.subr.mxu0 0.0
        %1093 = vmatpush1.xpose.msra.mxu0 0.0
        %1094 = vmatprep.subr.mxu0 0.0
        %1095 = vmatpush1.xpose.msra.mxu0 0.0
        %1096 = vmatprep.subr.mxu0 0.0
        %1097 = vmatpush1.xpose.msra.mxu0 0.0
        %1098 = vmatprep.subr.mxu0 0.0
        %1099 = vmatpush1.xpose.msra.mxu0 0.0
        %1100 = vmatprep.subr.mxu0 0.0
        %1101 = vmatpush1.xpose.msra.mxu0 0.0
        %1102 = vmatprep.subr.mxu0 0.0
        %1103 = vmatpush1.xpose.msra.mxu0 0.0
        %1104 = vmatprep.subr.mxu0 0.0
        %1105 = vmatpush1.xpose.msra.mxu0 0.0
        %1106 = vmatprep.subr.mxu0 0.0
        %1107 = vmatpush1.xpose.msra.mxu0 0.0
        %1108 = vmatprep.subr.mxu0 0.0
        %1109 = vmatpush1.xpose.msra.mxu0 0.0
        %1110 = vmatprep.subr.mxu0 0.0
        %1111 = vmatpush1.xpose.msra.mxu0 0.0
        %1112 = vmatprep.subr.mxu0 0.0
        %1113 = vmatpush1.xpose.msra.mxu0 0.0
        %1114 = vmatprep.subr.mxu0 0.0
        %1115 = vmatpush1.xpose.msra.mxu0 0.0
        %1116 = vmatprep.subr.mxu0 0.0
        %1117 = vmatpush1.xpose.msra.mxu0 0.0
        %1118 = vmatprep.subr.mxu0 0.0
        %1119 = vmatpush1.xpose.msra.mxu0 0.0
        %1120 = vmatprep.subr.mxu0 0.0
        %1121 = vmatpush1.xpose.msra.mxu0 0.0
        %1122 = vmatprep.subr.mxu0 0.0
        %1123 = vmatpush1.xpose.msra.mxu0 0.0
        %1124 = vmatprep.subr.mxu0 0.0
        %1125 = vmatpush1.xpose.msra.mxu0 0.0
        %1126 = vmatprep.subr.mxu0 0.0
        %1127 = vmatpush1.xpose.msra.mxu0 0.0
        %1128 = vmatprep.subr.mxu0 0.0
        %1129 = vmatpush1.xpose.msra.mxu0 0.0
        %1130 = vmatprep.subr.mxu0 0.0
        %1131 = vmatpush1.xpose.msra.mxu0 0.0
        %1132 = vmatprep.subr.mxu0 0.0
        %1133 = vmatpush1.xpose.msra.mxu0 0.0
        %1134 = vmatprep.subr.mxu0 0.0
        %1135 = vmatpush1.xpose.msra.mxu0 0.0
        %1136 = vmatprep.subr.mxu0 0.0
        %1137 = vmatpush1.xpose.msra.mxu0 0.0
        %1138 = vmatprep.subr.mxu0 0.0
        %1139 = vmatpush1.xpose.msra.mxu0 0.0
        %1140 = vmatprep.subr.mxu0 0.0
        %1141 = vmatpush1.xpose.msra.mxu0 0.0
        %1142 = vmatprep.subr.mxu0 0.0
        %1143 = vmatpush1.xpose.msra.mxu0 0.0
        %1144 = vmatprep.subr.mxu0 0.0
        %1145 = vmatpush1.xpose.msra.mxu0 0.0
        %1146 = vmatprep.subr.mxu0 0.0
        %1147 = vmatpush1.xpose.msra.mxu0 0.0
        %1148 = vmatprep.mubr.f32.mxu0 0.0
        %1149 = vmatmul.mubr.f32.gmra.mrb[0].mxu0 %v1078
        %v1150 = vpop.f32.mrb[0].mxu0
        %v1151 = vadd.f32 0.0, %v1150
        %v1152 = vpop.f32.mrb[0].mxu0
        %1153 = vdwg.mxu0
        %v1154 = vsel %vm328, %v1151, -inf
        %1155 = vmax.xlane.f32.xlu0 %v1154
        %v1156 = vpop.xlane.xlu0 %1155
        %v1157 = vsub.f32 %v1151, %v1156
        %v1158 = vmul.f32 %v1157, 1.442695
        %v1159 = vpow.pop %v1158
        %v1160 = vsel %vm328, %v1159, 0.0
        %1161 = vadd.xlane.f32.xlu0 %v1160
        %v1162 = vpop.xlane.xlu0 %1161
        %v1163 = vrcp.pop %v1162
        %v1164 = vmul.f32 %v1159, %v1163
        %1165 = vrot.lane.b32.xlu0 %v554, 104
        %v1166 = vpop.permute.xlu0 %1165
        %1167 = vrot.lane.b32.xlu0 %v559, 104
        %v1168 = vpop.permute.xlu0 %1167
        %v1172 = vsel %vm328, %v1164, 0
        %1174 = vmatprep.subr.mxu0 0.0
        %1175 = vmatpush1.msra.mxu0 %v1166
        %1176 = vmatprep.subr.mxu0 0.0
        %1177 = vmatpush1.msra.mxu0 %v1168
        %1178 = vmatprep.subr.mxu0 0.0
        %1179 = vmatpush1.msra.mxu0 0.0
        %1180 = vmatprep.subr.mxu0 0.0
        %1181 = vmatpush1.msra.mxu0 0.0
        %1182 = vmatprep.subr.mxu0 0.0
        %1183 = vmatpush1.msra.mxu0 0.0
        %1184 = vmatprep.subr.mxu0 0.0
        %1185 = vmatpush1.msra.mxu0 0.0
        %1186 = vmatprep.subr.mxu0 0.0
        %1187 = vmatpush1.msra.mxu0 0.0
        %1188 = vmatprep.subr.mxu0 0.0
        %1189 = vmatpush1.msra.mxu0 0.0
        %1190 = vmatprep.subr.mxu0 0.0
        %1191 = vmatpush1.msra.mxu0 0.0
        %1192 = vmatprep.subr.mxu0 0.0
        %1193 = vmatpush1.msra.mxu0 0.0
        %1194 = vmatprep.subr.mxu0 0.0
        %1195 = vmatpush1.msra.mxu0 0.0
        %1196 = vmatprep.subr.mxu0 0.0
        %1197 = vmatpush1.msra.mxu0 0.0
        %1198 = vmatprep.subr.mxu0 0.0
        %1199 = vmatpush1.msra.mxu0 0.0
        %1200 = vmatprep.subr.mxu0 0.0
        %1201 = vmatpush1.msra.mxu0 0.0
        %1202 = vmatprep.subr.mxu0 0.0
        %1203 = vmatpush1.msra.mxu0 0.0
        %1204 = vmatprep.subr.mxu0 0.0
        %1205 = vmatpush1.msra.mxu0 0.0
        %1206 = vmatprep.subr.mxu0 0.0
        %1207 = vmatpush1.msra.mxu0 0.0
        %1208 = vmatprep.subr.mxu0 0.0
        %1209 = vmatpush1.msra.mxu0 0.0
        %1210 = vmatprep.subr.mxu0 0.0
        %1211 = vmatpush1.msra.mxu0 0.0
        %1212 = vmatprep.subr.mxu0 0.0
        %1213 = vmatpush1.msra.mxu0 0.0
        %1214 = vmatprep.subr.mxu0 0.0
        %1215 = vmatpush1.msra.mxu0 0.0
        %1216 = vmatprep.subr.mxu0 0.0
        %1217 = vmatpush1.msra.mxu0 0.0
        %1218 = vmatprep.subr.mxu0 0.0
        %1219 = vmatpush1.msra.mxu0 0.0
        %1220 = vmatprep.subr.mxu0 0.0
        %1221 = vmatpush1.msra.mxu0 0.0
        %1222 = vmatprep.subr.mxu0 0.0
        %1223 = vmatpush1.msra.mxu0 0.0
        %1224 = vmatprep.subr.mxu0 0.0
        %1225 = vmatpush1.msra.mxu0 0.0
        %1226 = vmatprep.subr.mxu0 0.0
        %1227 = vmatpush1.msra.mxu0 0.0
        %1228 = vmatprep.subr.mxu0 0.0
        %1229 = vmatpush1.msra.mxu0 0.0
        %1230 = vmatprep.subr.mxu0 0.0
        %1231 = vmatpush1.msra.mxu0 0.0
        %1232 = vmatprep.subr.mxu0 0.0
        %1233 = vmatpush1.msra.mxu0 0.0
        %1234 = vmatprep.subr.mxu0 0.0
        %1235 = vmatpush1.msra.mxu0 0.0
        %1236 = vmatprep.subr.mxu0 0.0
        %1237 = vmatpush1.msra.mxu0 0.0
        %1238 = vmatprep.mubr.f32.mxu0 0.0
        %1239 = vmatmul.mubr.f32.gmra.mrb[0].mxu0 %v1172
        %v1240 = vpop.f32.mrb[0].mxu0
        %v1241 = vadd.f32 0.0, %v1240
        %v1242 = vpop.f32.mrb[0].mxu0
        %1243 = vdwg.mxu0
        %1245 = vrot.lane.b32.xlu0 %v897, 8
        %v1246 = vpop.permute.xlu0 %1245
        %1249 = vrot.lane.b32.xlu0 %v1069, 16
        %v1250 = vpop.permute.xlu0 %1249
        %1253 = vrot.lane.b32.xlu0 %v1241, 24
        %v1254 = vpop.permute.xlu0 %1253
        %v1256 = vsel %vm562, %v723, %v1246
        %v1257 = vsel %vm328, %v1256, %v1250
        %vm1258 = vcmask 195584
        %v1259 = vsel %vm1258, %v1257, %v1254
        %vm1260 = vcmask 261120
        %1261 = vst.msk [vmem:[%s322] sm:$0xff] %vm1260, %v1259
        %s1262 = sand.u32 %s149, 1
        %s1263 = scalar_lea.sflag [#allocation4], %s1262
        %s1264 = sand.u32 %s149, 1
        %s1265 = smul.addr %s1264, 8
        %s1266 = scalar_lea.vmem [#allocation11], %s1265
        // Predicated region
        $region61: #{tpu_custom_call.1} parent=39 // pred_check
          %p1267 = pneg %p159
        $region62: #{tpu_custom_call.1} parent=39 // pred_check_branch
          %1269 = sbr.rel (%p1267) target = $region64
        $region63: #{tpu_custom_call.1} parent=39 // pred_region
          %s1271 = ssub.s32 128, 128
          %1272 = vsyncadd %s1263, %s1271
          %s1273 = smul.addr %s26, 128
          %s1274 = scalar_lea.hbm %s5, %s1273
          %s1276 = sshll.u32 %s1266, 4
          %s1277 = int_to_ptr.vmem [resolvable:$true] %s1276
          %1279 = dma.vmem_to_hbm [thread:$0]  %s1277, 128, %s1274, %s1263
        $region64: #{tpu_custom_call.1} parent=39 // pred_fallthru
          _
      $region40: #{tpu_custom_call.1} parent=5 // pred_fallthru
        _
      %p1280 = scmp.le.s32.totalorder 2, %s21
      // Predicated region
      $region65: #{tpu_custom_call.1} parent=5 // pred_check
        %p1281 = pneg %p1280
      $region66: #{tpu_custom_call.1} parent=5 // pred_check_branch
        %1283 = sbr.rel (%p1281) target = $region68
      $region67: #{tpu_custom_call.1} parent=5 // pred_region
        %s1284 = ssub.s32 %s21, 2
        // Predicated region
        $region69: #{tpu_custom_call.1} parent=67 // pred_check
          %p1285 = pneg %p165
        $region70: #{tpu_custom_call.1} parent=67 // pred_check_branch
          %1287 = sbr.rel (%p1285) target = $region72
        $region71: #{tpu_custom_call.1} parent=67 // pred_region
          %s1288 = sand.u32 %s150, 1
          %s1289 = scalar_lea.sflag [#allocation4], %s1288
          %s1290 = sand.u32 %s150, 1
          %s1291 = smul.addr %s1290, 8
          %s1292 = scalar_lea.vmem [#allocation11], %s1291
          %1293 = dma.done %s1289, 128
        $region72: #{tpu_custom_call.1} parent=67 // pred_fallthru
          _
      $region68: #{tpu_custom_call.1} parent=5 // pred_fallthru
        _
    $region6: #{tpu_custom_call.1} parent=1 // loop_footer
      %s25 = sadd.s32 1, %s21
    $region7: #{tpu_custom_call.1} parent=1 // loop_footer_branch
      %20 = sbr.rel target = $region3
    $region8: #{tpu_custom_call.1} parent=1 // loop_exit
      _
    %1294 = vsyncpa [#allocation3], 1
    %s1295 = scalar_lea.sflag [#allocation3], 1
    %1296 = vsyncpa %s1295, 1
    %1297 = vsyncpa [#allocation6], 1
    %s1298 = scalar_lea.sflag [#allocation6], 1
    %1299 = vsyncpa %s1298, 1
    %1300 = vsyncpa [#allocation9], 1
    %1301 = vsyncpa [#allocation4], 1
    %s1302 = scalar_lea.sflag [#allocation4], 1
    %1303 = vsyncpa %s1302, 1

</llo_original>
